<compile_context>
chip_gen: v7x
topology: tpu7x:2x2x1
jax: 0.10.0
libtpu: 0.0.40
codegen_flags: <defaults>
</compile_context>

<pallas_src>
import functools

import jax
import jax.numpy as jnp
from jax.experimental import pallas as pl
from jax.experimental.pallas import tpu as pltpu


def _conv_glu_residual_kernel(x_ref, w3_ref, b_ref, o_ref, *, bn, c, mxu_dtype):
    """out[n] = x[n] + GLU(Conv1d(x[n], k=3, pad=1), dim=channels), NCL layout.

    x_ref:  (BN, C, L)   input block, length in lanes
    w3_ref: (2C, 3C)     tap-concatenated weights, w3[:, k*C + i] = w[:, i, k]
    b_ref:  (2C, 1)      conv bias (broadcast along lanes)
    o_ref:  (BN, C, L)   residual + GLU output
    """
    L = x_ref.shape[-1]
    w3 = w3_ref[...]                                   # VMEM-resident, already mxu dtype
    b = b_ref[...].astype(jnp.float32)                 # (2C, 1)
    b_val, b_gate = b[:c, :], b[c:, :]

    # Hoisted boundary masks: identical for every batch element, so compute the
    # iota / compares once (JAX does not CSE broadcast_in_dim inside the loop).
    lane = jax.lax.broadcasted_iota(jnp.int32, (x_ref.shape[1], L), 1)
    first_lane = lane == 0
    last_lane = lane == L - 1

    for n in range(bn):                                # static unroll over batch chunk
        x = x_ref[n]                                   # (C, L)
        # Conv taps (padding=1): k=0 sees x[l-1], k=1 sees x[l], k=2 sees x[l+1].
        # pltpu.roll rides the XLU slot; the lane mask folds in the zero padding.
        x_prev = jnp.where(first_lane, jnp.zeros_like(x),
                           pltpu.roll(x, shift=1, axis=1))
        x_next = jnp.where(last_lane, jnp.zeros_like(x),
                           pltpu.roll(x, shift=L - 1, axis=1))
        x3 = jnp.concatenate([x_prev, x, x_next], axis=0).astype(mxu_dtype)  # (3C, L)

        # Single tap-concatenated MXU matmul, f32 accumulation.
        acc = jnp.dot(w3, x3, preferred_element_type=jnp.float32)            # (2C, L)

        # Bias folded into the GLU epilogue; GLU split along channels (dim=1 in NCL).
        glu = (acc[:c, :] + b_val) * jax.nn.sigmoid(acc[c:, :] + b_gate)
        o_ref[n] = (x.astype(jnp.float32) + glu).astype(o_ref.dtype)


def _pick_batch_block(n, c, l, itemsize, target=8, vmem_budget=8 << 20):
    """Largest divisor of n that is <= target and keeps the double-buffered
    (in + out) blocks within a conservative VMEM budget."""
    per_n = 4 * c * l * itemsize                      # 2 buffers x 2 (in + out)
    cap = max(1, min(target, vmem_budget // max(per_n, 1)))
    bn = 1
    for d in range(1, min(n, cap) + 1):
        if n % d == 0:
            bn = d
    return bn


def conv_glu_residual_ncl(x_ncl, w_oik, b, *, mxu_dtype=None):
    """x_ncl: (N, C, L); w_oik: (2C, C, 3); b: (2C,). Returns (N, C, L) in NCL."""
    N, C, L = x_ncl.shape
    if mxu_dtype is None:
        mxu_dtype = x_ncl.dtype
    # Tap-concatenated weights: (2C, C, 3) -> (2C, 3, C) -> (2C, 3C).  Tiny, weight-only.
    w3 = jnp.transpose(w_oik, (0, 2, 1)).reshape(2 * C, 3 * C).astype(mxu_dtype)
    b2 = b.reshape(2 * C, 1).astype(jnp.float32)

    itemsize = jnp.dtype(x_ncl.dtype).itemsize
    bn = _pick_batch_block(N, C, L, itemsize)
    kernel = functools.partial(
        _conv_glu_residual_kernel, bn=bn, c=C, mxu_dtype=mxu_dtype)

    flops = 2 * N * (2 * C) * (3 * C) * L + 6 * N * C * L
    bytes_accessed = (2 * x_ncl.size * itemsize                 # x in + out
                      + w3.size * jnp.dtype(mxu_dtype).itemsize
                      + b2.size * 4)

    return pl.pallas_call(
        kernel,
        out_shape=jax.ShapeDtypeStruct((N, C, L), x_ncl.dtype),
        grid_spec=pltpu.PrefetchScalarGridSpec(
            num_scalar_prefetch=0,
            grid=(N // bn,),
            in_specs=[
                pl.BlockSpec((bn, C, L), lambda i: (i, 0, 0)),
                pl.BlockSpec((2 * C, 3 * C), lambda i: (0, 0)),   # resident weights
                pl.BlockSpec((2 * C, 1), lambda i: (0, 0)),       # resident bias
            ],
            out_specs=pl.BlockSpec((bn, C, L), lambda i: (i, 0, 0)),
        ),
        compiler_params=pltpu.CompilerParams(
            dimension_semantics=("parallel",)),
        cost_estimate=pl.CostEstimate(
            flops=flops,
            transcendentals=N * C * L,
            bytes_accessed=bytes_accessed),
    )(x_ncl, w3, b2)


def init_params(key, input_dim, num_layers=1):
    """Deterministic params matching nn.Conv1d((i+1)*d, 2*(i+1)*d, 3, pad=1)."""
    params = []
    for i in range(num_layers):
        c_in = (i + 1) * input_dim
        c_out = 2 * (i + 1) * input_dim
        key, kw, kb = jax.random.split(key, 3)
        bound = 1.0 / (c_in * 3) ** 0.5                 # PyTorch default bound
        w = jax.random.uniform(kw, (c_out, c_in, 3), jnp.float32, -bound, bound)
        b = jax.random.uniform(kb, (c_out,), jnp.float32, -bound, bound)
        params.append((w, b))
    return params


def conv_encoder_forward(source_ncl, params, mxu_dtype=None):
    """Mirrors ConvEncoder.forward: o = GLU(conv(input_source)); out = input_source + o."""
    input_source = source_ncl                           # never updated, as in reference
    obtained_output = None
    for (w_oik, b) in params:
        obtained_output = conv_glu_residual_ncl(
            input_source, w_oik, b, mxu_dtype=mxu_dtype)
    return obtained_output


def conv_encoder_reference(source_ncl, params):
    """Pure-JAX reference (no Pallas) for verification."""
    out = None
    for (w, b) in params:
        o = jax.lax.conv_general_dilated(
            source_ncl, w, window_strides=(1,), padding=((1, 1),),
            dimension_numbers=("NCH", "OIH", "NCH"))
        o = o + b[None, :, None]
        c = o.shape[1] // 2
        o = o[:, :c] * jax.nn.sigmoid(o[:, c:])
        out = source_ncl + o
    return out


if __name__ == "__main__":
    key = jax.random.PRNGKey(0)
    batch, input_dim, seq_len = 2, 8, 16
    num_layers = 1  # only runnable config of the reference forward

    k_x, k_p = jax.random.split(key)
    source = jax.random.normal(k_x, (batch, input_dim, seq_len), jnp.float32)
    params = init_params(k_p, input_dim, num_layers=num_layers)

    ref = jax.block_until_ready(conv_encoder_reference(source, params))

    # f32 MXU operands: tight check against the XLA reference.
    out_f32 = jax.block_until_ready(conv_encoder_forward(source, params))
    assert out_f32.shape == (batch, input_dim, seq_len)
    assert jnp.allclose(out_f32, ref, atol=1e-5, rtol=1e-5), "f32 mismatch vs reference"

    # bf16 MXU operands (v6e/v7x fast path): f32 accumulation + f32 epilogue.
    out_bf16 = jax.block_until_ready(
        conv_encoder_forward(source, params, mxu_dtype=jnp.bfloat16))
    assert jnp.allclose(out_bf16, ref, atol=5e-2, rtol=5e-2), "bf16 mismatch vs reference"

    print("KERNEL_OK")
</pallas_src>

<mosaic_0001>
module attributes {stable_mosaic.version = 11 : i64} {
  func.func @_conv_glu_residual_kernel(%arg0: i32, %arg1: memref<2x8x16xf32, #tpu.memory_space<vmem>>, %arg2: memref<16x24xf32, #tpu.memory_space<vmem>>, %arg3: memref<16x1xf32, #tpu.memory_space<vmem>>, %arg4: memref<2x8x16xf32, #tpu.memory_space<vmem>>) attributes {dimension_semantics = [#tpu.dimension_semantics<parallel>], iteration_bounds = array<i64: 1>, scalar_prefetch = 0 : i64, scratch_operands = 0 : i64, tpu.core_type = #tpu.core_type<tc>, window_params = [{transform_indices = @transform_0, window_bounds = array<i64: 2, 8, 16>}, {pipeline_mode = #tpu.pipeline_mode<synchronous>, transform_indices = @transform_1, window_bounds = array<i64: 16, 24>}, {pipeline_mode = #tpu.pipeline_mode<synchronous>, transform_indices = @transform_2, window_bounds = array<i64: 16, 1>}, {transform_indices = @transform_3, window_bounds = array<i64: 2, 8, 16>}]} {
    %c0 = arith.constant 0 : index
    %c0_0 = arith.constant 0 : index
    %0 = vector.load %arg2[%c0, %c0_0] : memref<16x24xf32, #tpu.memory_space<vmem>>, vector<16x24xf32>
    %c0_1 = arith.constant 0 : index
    %c0_2 = arith.constant 0 : index
    %1 = vector.load %arg3[%c0_1, %c0_2] : memref<16x1xf32, #tpu.memory_space<vmem>>, vector<16x1xf32>
    %2 = vector.extract_strided_slice %1 {offsets = [0, 0], sizes = [8, 1], strides = [1, 1]} : vector<16x1xf32> to vector<8x1xf32>
    %3 = vector.extract_strided_slice %1 {offsets = [8, 0], sizes = [8, 1], strides = [1, 1]} : vector<16x1xf32> to vector<8x1xf32>
    %4 = tpu.iota {dimensions = array<i32: 1>} : vector<8x16xi32>
    %c0_i32 = arith.constant 0 : i32
    %5 = vector.broadcast %c0_i32 : i32 to vector<8x16xi32>
    %6 = arith.cmpi eq, %4, %5 : vector<8x16xi32>
    %c15_i32 = arith.constant 15 : i32
    %7 = vector.broadcast %c15_i32 : i32 to vector<8x16xi32>
    %8 = arith.cmpi eq, %4, %7 : vector<8x16xi32>
    %c0_3 = arith.constant 0 : index
    %c0_4 = arith.constant 0 : index
    %c0_5 = arith.constant 0 : index
    %9 = vector.load %arg1[%c0_3, %c0_4, %c0_5] : memref<2x8x16xf32, #tpu.memory_space<vmem>>, vector<1x8x16xf32>
    %10 = vector.shape_cast %9 : vector<1x8x16xf32> to vector<8x16xf32>
    %cst = arith.constant 0.000000e+00 : f32
    %11 = vector.broadcast %cst : f32 to vector<8x16xf32>
    %c1_i32 = arith.constant 1 : i32
    %12 = tpu.dynamic_rotate %10 by %c1_i32 dim 1 : vector<8x16xf32>, i32 -> vector<8x16xf32>
    %13 = arith.select %6, %11, %12 : vector<8x16xi1>, vector<8x16xf32>
    %cst_6 = arith.constant 0.000000e+00 : f32
    %14 = vector.broadcast %cst_6 : f32 to vector<8x16xf32>
    %c15_i32_7 = arith.constant 15 : i32
    %15 = tpu.dynamic_rotate %10 by %c15_i32_7 dim 1 : vector<8x16xf32>, i32 -> vector<8x16xf32>
    %16 = arith.select %8, %14, %15 : vector<8x16xi1>, vector<8x16xf32>
    %17 = tpu.concatenate %13, %10, %16 in 0 : vector<8x16xf32>, vector<8x16xf32>, vector<8x16xf32> -> vector<24x16xf32>
    %cst_8 = arith.constant dense<0.000000e+00> : vector<16x16xf32>
    %18 = tpu.matmul %0, %17, %cst_8 {dimension_numbers = #tpu.dot_dimension_numbers<[1], [0], [0], [1], [0, 0, 1, 1], [], []>} : vector<16x24xf32>, vector<24x16xf32>, vector<16x16xf32> -> vector<16x16xf32>
    %19 = vector.extract_strided_slice %18 {offsets = [0, 0], sizes = [8, 16], strides = [1, 1]} : vector<16x16xf32> to vector<8x16xf32>
    %20 = vector.broadcast %2 : vector<8x1xf32> to vector<8x16xf32>
    %21 = arith.addf %19, %20 : vector<8x16xf32>
    %22 = vector.extract_strided_slice %18 {offsets = [8, 0], sizes = [8, 16], strides = [1, 1]} : vector<16x16xf32> to vector<8x16xf32>
    %23 = vector.broadcast %3 : vector<8x1xf32> to vector<8x16xf32>
    %24 = arith.addf %22, %23 : vector<8x16xf32>
    %25 = arith.negf %24 : vector<8x16xf32>
    %26 = math.exp %25 : vector<8x16xf32>
    %cst_9 = arith.constant 1.000000e+00 : f32
    %27 = vector.broadcast %cst_9 : f32 to vector<8x16xf32>
    %28 = arith.addf %27, %26 : vector<8x16xf32>
    %29 = arith.divf %27, %28 : vector<8x16xf32>
    %30 = arith.mulf %21, %29 : vector<8x16xf32>
    %31 = arith.addf %10, %30 : vector<8x16xf32>
    %c0_10 = arith.constant 0 : index
    %c0_11 = arith.constant 0 : index
    %c0_12 = arith.constant 0 : index
    %32 = vector.load %arg4[%c0_10, %c0_11, %c0_12] : memref<2x8x16xf32, #tpu.memory_space<vmem>>, vector<1x8x16xf32>
    %33 = vector.shape_cast %32 : vector<1x8x16xf32> to vector<8x16xf32>
    %34 = vector.shape_cast %31 : vector<8x16xf32> to vector<1x8x16xf32>
    tpu.vector_store %arg4[%c0_10, %c0_11, %c0_12], %34 {strides = array<i32>} : memref<2x8x16xf32, #tpu.memory_space<vmem>>, vector<1x8x16xf32>,
    %c1 = arith.constant 1 : index
    %c0_13 = arith.constant 0 : index
    %c0_14 = arith.constant 0 : index
    %35 = vector.load %arg1[%c1, %c0_13, %c0_14] : memref<2x8x16xf32, #tpu.memory_space<vmem>>, vector<1x8x16xf32>
    %36 = vector.shape_cast %35 : vector<1x8x16xf32> to vector<8x16xf32>
    %cst_15 = arith.constant 0.000000e+00 : f32
    %37 = vector.broadcast %cst_15 : f32 to vector<8x16xf32>
    %c1_i32_16 = arith.constant 1 : i32
    %38 = tpu.dynamic_rotate %36 by %c1_i32_16 dim 1 : vector<8x16xf32>, i32 -> vector<8x16xf32>
    %39 = arith.select %6, %37, %38 : vector<8x16xi1>, vector<8x16xf32>
    %cst_17 = arith.constant 0.000000e+00 : f32
    %40 = vector.broadcast %cst_17 : f32 to vector<8x16xf32>
    %c15_i32_18 = arith.constant 15 : i32
    %41 = tpu.dynamic_rotate %36 by %c15_i32_18 dim 1 : vector<8x16xf32>, i32 -> vector<8x16xf32>
    %42 = arith.select %8, %40, %41 : vector<8x16xi1>, vector<8x16xf32>
    %43 = tpu.concatenate %39, %36, %42 in 0 : vector<8x16xf32>, vector<8x16xf32>, vector<8x16xf32> -> vector<24x16xf32>
    %cst_19 = arith.constant dense<0.000000e+00> : vector<16x16xf32>
    %44 = tpu.matmul %0, %43, %cst_19 {dimension_numbers = #tpu.dot_dimension_numbers<[1], [0], [0], [1], [0, 0, 1, 1], [], []>} : vector<16x24xf32>, vector<24x16xf32>, vector<16x16xf32> -> vector<16x16xf32>
    %45 = vector.extract_strided_slice %44 {offsets = [0, 0], sizes = [8, 16], strides = [1, 1]} : vector<16x16xf32> to vector<8x16xf32>
    %46 = vector.broadcast %2 : vector<8x1xf32> to vector<8x16xf32>
    %47 = arith.addf %45, %46 : vector<8x16xf32>
    %48 = vector.extract_strided_slice %44 {offsets = [8, 0], sizes = [8, 16], strides = [1, 1]} : vector<16x16xf32> to vector<8x16xf32>
    %49 = vector.broadcast %3 : vector<8x1xf32> to vector<8x16xf32>
    %50 = arith.addf %48, %49 : vector<8x16xf32>
    %51 = arith.negf %50 : vector<8x16xf32>
    %52 = math.exp %51 : vector<8x16xf32>
    %cst_20 = arith.constant 1.000000e+00 : f32
    %53 = vector.broadcast %cst_20 : f32 to vector<8x16xf32>
    %54 = arith.addf %53, %52 : vector<8x16xf32>
    %55 = arith.divf %53, %54 : vector<8x16xf32>
    %56 = arith.mulf %47, %55 : vector<8x16xf32>
    %57 = arith.addf %36, %56 : vector<8x16xf32>
    %c1_21 = arith.constant 1 : index
    %c0_22 = arith.constant 0 : index
    %c0_23 = arith.constant 0 : index
    %58 = vector.load %arg4[%c1_21, %c0_22, %c0_23] : memref<2x8x16xf32, #tpu.memory_space<vmem>>, vector<1x8x16xf32>
    %59 = vector.shape_cast %58 : vector<1x8x16xf32> to vector<8x16xf32>
    %60 = vector.shape_cast %57 : vector<8x16xf32> to vector<1x8x16xf32>
    tpu.vector_store %arg4[%c1_21, %c0_22, %c0_23], %60 {strides = array<i32>} : memref<2x8x16xf32, #tpu.memory_space<vmem>>, vector<1x8x16xf32>,
    return
  }
  func.func @transform_0(%arg0: i32) -> (i32, i32, i32) {
    %c0_i32 = arith.constant 0 : i32
    %c0_i32_0 = arith.constant 0 : i32
    %c0_i32_1 = arith.constant 0 : i32
    return %arg0, %c0_i32, %c0_i32_0 : i32, i32, i32
  }
  func.func @transform_1(%arg0: i32) -> (i32, i32) {
    %c0_i32 = arith.constant 0 : i32
    %c0_i32_0 = arith.constant 0 : i32
    %c0_i32_1 = arith.constant 0 : i32
    return %c0_i32, %c0_i32_0 : i32, i32
  }
  func.func @transform_2(%arg0: i32) -> (i32, i32) {
    %c0_i32 = arith.constant 0 : i32
    %c0_i32_0 = arith.constant 0 : i32
    %c0_i32_1 = arith.constant 0 : i32
    return %c0_i32, %c0_i32_0 : i32, i32
  }
  func.func @transform_3(%arg0: i32) -> (i32, i32, i32) {
    %c0_i32 = arith.constant 0 : i32
    %c0_i32_0 = arith.constant 0 : i32
    %c0_i32_1 = arith.constant 0 : i32
    return %arg0, %c0_i32, %c0_i32_0 : i32, i32, i32
  }
}

</mosaic_0001>

<llo_original>
// kernel: tpu_custom_call.1
$region0: #{tpu_custom_call.1}
  #allocation0 [shape = 'u32[]', space=smem, size = 0x4, offset = 0x4, fixed_abs, tag = 'smem constant byte address 0x4 - core index']
  #allocation1 [shape = 'u32[144,128]{1,0:T(1,128)}', space=vmem, size = 0x12000, scoped, tag = 'internal scratch']
  %s0 = inlined_call_operand.vmem [shape: f32[2,8,16], index: 0, kind: input, shape index: {}]
  %s1 = inlined_call_operand.hbm [shape: f32[16,24], index: 1, kind: input, shape index: {}]
  %s2 = inlined_call_operand.vmem [shape: f32[16,1], index: 2, kind: input, shape index: {}]
  %s3 = inlined_call_operand.hbm [shape: f32[2,8,16], index: 3, kind: output, shape index: {}]
  %s4 = sld [smem:[#allocation0]]
  $region26: #{tpu_custom_call.1} parent=0
    _
  %s6 = ssub.s32 1, %s4
  %s7 = scalar_select 0, %s6, %s4
  $region1: #{tpu_custom_call.1} parent=0
    #allocation2 [shape = 'u8[8192]{0}', space=vmem, size = 0x2000, scoped, tag = 'input window, operand 1, single buffered']
    #allocation3 [shape = 's32[1]{0}', space=sflag, size = 0x4, scoped, tag = 'scoped memory for tpu_custom_call.1']
    #allocation4 [shape = 's32[1]{0}', space=sflag, size = 0x4, scoped, tag = 'scoped memory for tpu_custom_call.1']
    #allocation5 [shape = 'u8[8192]{0}', space=vmem, size = 0x2000, scoped, tag = 'output window, operand 0, single buffered']
    %8 = vsyncpa [#allocation3], 0
    %9 = vsyncpa [#allocation4], 0
    // Predicated region
    $region2: #{tpu_custom_call.1} parent=1 // pred_check
      _
    $region3: #{tpu_custom_call.1} parent=1 // pred_check_branch
      %11 = sbr.rel (0) target = $region5
    $region4: #{tpu_custom_call.1} parent=1 // pred_region
      _
    $region5: #{tpu_custom_call.1} parent=1 // pred_fallthru
      _
    // Predicated region
    $region6: #{tpu_custom_call.1} parent=1 // pred_check
      _
    $region7: #{tpu_custom_call.1} parent=1 // pred_check_branch
      %13 = sbr.rel (0) target = $region9
    $region8: #{tpu_custom_call.1} parent=1 // pred_region
      %s15 = ssub.s32 256, 256
      %16 = vsyncadd [#allocation3], %s15
      %s17 = sshll.u32 [#allocation2], 4
      %s18 = int_to_ptr.vmem [resolvable:$true] %s17
      %23 = dma.hbm_to_vmem [thread:$0]  %s1, 256, %s18, [#allocation3], 128, 128, 8
    $region9: #{tpu_custom_call.1} parent=1 // pred_fallthru
      _
    // Predicated region
    $region10: #{tpu_custom_call.1} parent=1 // pred_check
      _
    $region11: #{tpu_custom_call.1} parent=1 // pred_check_branch
      %25 = sbr.rel (0) target = $region13
    $region12: #{tpu_custom_call.1} parent=1 // pred_region
      _
    $region13: #{tpu_custom_call.1} parent=1 // pred_fallthru
      _
    // Predicated region
    $region14: #{tpu_custom_call.1} parent=1 // pred_check
      _
    $region15: #{tpu_custom_call.1} parent=1 // pred_check_branch
      %27 = sbr.rel (0) target = $region17
    $region16: #{tpu_custom_call.1} parent=1 // pred_region
      %28 = dma.done [#allocation3], 256
    $region17: #{tpu_custom_call.1} parent=1 // pred_fallthru
      _
    %v29 = vld [vmem:[#allocation2] sm:$0xff]
    %v30 = vld [vmem:[#allocation2 + $0x8] sm:$0xff]
    %v31 = vld [vmem:[%s2] sm:$0xff]
    %v32 = vld [vmem:[%s2 + $0x8] sm:$0xff]
    %v33 = vlaneseq
    %v34 = vand.u32 %v33, 127
    %vm35 = vcmp.eq.s32.totalorder %v34, 0
    %vm36 = vcmp.eq.s32.totalorder %v34, 15
    %v37 = vld [vmem:[%s0] sm:$0xff]
    %vm38 = vcmask 1047680
    %39 = vrot.lane.b32.xlu0 %v37, 16
    %v40 = vpop.permute.xlu0 %39
    %v41 = vsel %vm38, %v40, %v37
    %42 = vrot.lane.b32.xlu0 %v41, 16
    %v43 = vpop.permute.xlu0 %42
    %v44 = vsel %vm38, %v43, %v37
    %46 = vrot.lane.b32.xlu0 %v44, 113
    %v47 = vpop.permute.xlu0 %46
    %v49 = vsel %vm35, 0.0, %v47
    %50 = vrot.lane.b32.xlu0 %v44, 127
    %v51 = vpop.permute.xlu0 %50
    %v53 = vsel %vm36, 0.0, %v51
    %vm54 = vcmask 195584
    %v56 = vsel %vm54, %v29, 0
    %v59 = vsel %vm54, %v30, 0
    %61 = vmatprep.subr.mxu0 0.0
    %62 = vmatpush1.msra.mxu0 %v49
    %63 = vmatprep.subr.mxu0 0.0
    %64 = vmatpush1.msra.mxu0 %v37
    %65 = vmatprep.subr.mxu0 0.0
    %66 = vmatpush1.msra.mxu0 %v53
    %67 = vmatprep.subr.mxu0 0.0
    %68 = vmatpush1.msra.mxu0 0.0
    %69 = vmatprep.subr.mxu0 0.0
    %70 = vmatpush1.msra.mxu0 0.0
    %71 = vmatprep.subr.mxu0 0.0
    %72 = vmatpush1.msra.mxu0 0.0
    %73 = vmatprep.subr.mxu0 0.0
    %74 = vmatpush1.msra.mxu0 0.0
    %75 = vmatprep.subr.mxu0 0.0
    %76 = vmatpush1.msra.mxu0 0.0
    %77 = vmatprep.subr.mxu0 0.0
    %78 = vmatpush1.msra.mxu0 0.0
    %79 = vmatprep.subr.mxu0 0.0
    %80 = vmatpush1.msra.mxu0 0.0
    %81 = vmatprep.subr.mxu0 0.0
    %82 = vmatpush1.msra.mxu0 0.0
    %83 = vmatprep.subr.mxu0 0.0
    %84 = vmatpush1.msra.mxu0 0.0
    %85 = vmatprep.subr.mxu0 0.0
    %86 = vmatpush1.msra.mxu0 0.0
    %87 = vmatprep.subr.mxu0 0.0
    %88 = vmatpush1.msra.mxu0 0.0
    %89 = vmatprep.subr.mxu0 0.0
    %90 = vmatpush1.msra.mxu0 0.0
    %91 = vmatprep.subr.mxu0 0.0
    %92 = vmatpush1.msra.mxu0 0.0
    %93 = vmatprep.subr.mxu0 0.0
    %94 = vmatpush1.msra.mxu0 0.0
    %95 = vmatprep.subr.mxu0 0.0
    %96 = vmatpush1.msra.mxu0 0.0
    %97 = vmatprep.subr.mxu0 0.0
    %98 = vmatpush1.msra.mxu0 0.0
    %99 = vmatprep.subr.mxu0 0.0
    %100 = vmatpush1.msra.mxu0 0.0
    %101 = vmatprep.subr.mxu0 0.0
    %102 = vmatpush1.msra.mxu0 0.0
    %103 = vmatprep.subr.mxu0 0.0
    %104 = vmatpush1.msra.mxu0 0.0
    %105 = vmatprep.subr.mxu0 0.0
    %106 = vmatpush1.msra.mxu0 0.0
    %107 = vmatprep.subr.mxu0 0.0
    %108 = vmatpush1.msra.mxu0 0.0
    %109 = vmatprep.subr.mxu0 0.0
    %110 = vmatpush1.msra.mxu0 0.0
    %111 = vmatprep.subr.mxu0 0.0
    %112 = vmatpush1.msra.mxu0 0.0
    %113 = vmatprep.subr.mxu0 0.0
    %114 = vmatpush1.msra.mxu0 0.0
    %115 = vmatprep.subr.mxu0 0.0
    %116 = vmatpush1.msra.mxu0 0.0
    %117 = vmatprep.subr.mxu0 0.0
    %118 = vmatpush1.msra.mxu0 0.0
    %119 = vmatprep.subr.mxu0 0.0
    %120 = vmatpush1.msra.mxu0 0.0
    %121 = vmatprep.subr.mxu0 0.0
    %122 = vmatpush1.msra.mxu0 0.0
    %123 = vmatprep.subr.mxu0 0.0
    %124 = vmatpush1.msra.mxu0 0.0
    %125 = vmatprep.mubr.f32.mxu0 0.0
    %126 = vmatmul.mubr.f32.gmra.mrb[0].mxu0 %v56
    %v127 = vpop.f32.mrb[0].mxu0
    %v128 = vadd.f32 0.0, %v127
    %v129 = vpop.f32.mrb[0].mxu0
    %130 = vmatprep.mubr.f32.mxu0 0.0
    %131 = vmatmul.mubr.f32.gmra.mrb[0].mxu0 %v59
    %v132 = vpop.f32.mrb[0].mxu0
    %v133 = vadd.f32 0.0, %v132
    %v134 = vpop.f32.mrb[0].mxu0
    %135 = vdwg.mxu0
    %137 = vset.pattern.permute.xlu0 0
    %138 = vperm.xlu0 %137, %v31
    %v139 = vpop.permute.xlu0 %138
    %v141 = vadd.f32 %v128, %v139
    %143 = vset.pattern.permute.xlu0 0
    %144 = vperm.xlu0 %143, %v32
    %v145 = vpop.permute.xlu0 %144
    %v147 = vadd.f32 %v133, %v145
    %v148 = vxor.u32 %v147, 2147483648
    %v149 = vmul.f32 %v148, 1.442695
    %v150 = vpow.pop %v149
    %v151 = vadd.f32 %v150, 1.0
    %v152 = vrcp.pop %v151
    %v153 = vmul.f32 1.0, %v152
    %v154 = vmul.f32 %v141, %v153
    %v155 = vadd.f32 %v37, %v154
    %vm156 = vcmask 130048
    %157 = vst.msk [vmem:[#allocation5] sm:$0xff] %vm156, %v155
    %s158 = scalar_lea.vmem %s0, 8
    %v159 = vld [vmem:[%s158] sm:$0xff]
    %160 = vrot.lane.b32.xlu0 %v159, 16
    %v161 = vpop.permute.xlu0 %160
    %v162 = vsel %vm38, %v161, %v159
    %163 = vrot.lane.b32.xlu0 %v162, 16
    %v164 = vpop.permute.xlu0 %163
    %v165 = vsel %vm38, %v164, %v159
    %167 = vrot.lane.b32.xlu0 %v165, 113
    %v168 = vpop.permute.xlu0 %167
    %v170 = vsel %vm35, 0.0, %v168
    %171 = vrot.lane.b32.xlu0 %v165, 127
    %v172 = vpop.permute.xlu0 %171
    %v174 = vsel %vm36, 0.0, %v172
    %175 = vmatprep.subr.mxu0 0.0
    %176 = vmatpush1.msra.mxu0 %v170
    %177 = vmatprep.subr.mxu0 0.0
    %178 = vmatpush1.msra.mxu0 %v159
    %179 = vmatprep.subr.mxu0 0.0
    %180 = vmatpush1.msra.mxu0 %v174
    %181 = vmatprep.subr.mxu0 0.0
    %182 = vmatpush1.msra.mxu0 0.0
    %183 = vmatprep.subr.mxu0 0.0
    %184 = vmatpush1.msra.mxu0 0.0
    %185 = vmatprep.subr.mxu0 0.0
    %186 = vmatpush1.msra.mxu0 0.0
    %187 = vmatprep.subr.mxu0 0.0
    %188 = vmatpush1.msra.mxu0 0.0
    %189 = vmatprep.subr.mxu0 0.0
    %190 = vmatpush1.msra.mxu0 0.0
    %191 = vmatprep.subr.mxu0 0.0
    %192 = vmatpush1.msra.mxu0 0.0
    %193 = vmatprep.subr.mxu0 0.0
    %194 = vmatpush1.msra.mxu0 0.0
    %195 = vmatprep.subr.mxu0 0.0
    %196 = vmatpush1.msra.mxu0 0.0
    %197 = vmatprep.subr.mxu0 0.0
    %198 = vmatpush1.msra.mxu0 0.0
    %199 = vmatprep.subr.mxu0 0.0
    %200 = vmatpush1.msra.mxu0 0.0
    %201 = vmatprep.subr.mxu0 0.0
    %202 = vmatpush1.msra.mxu0 0.0
    %203 = vmatprep.subr.mxu0 0.0
    %204 = vmatpush1.msra.mxu0 0.0
    %205 = vmatprep.subr.mxu0 0.0
    %206 = vmatpush1.msra.mxu0 0.0
    %207 = vmatprep.subr.mxu0 0.0
    %208 = vmatpush1.msra.mxu0 0.0
    %209 = vmatprep.subr.mxu0 0.0
    %210 = vmatpush1.msra.mxu0 0.0
    %211 = vmatprep.subr.mxu0 0.0
    %212 = vmatpush1.msra.mxu0 0.0
    %213 = vmatprep.subr.mxu0 0.0
    %214 = vmatpush1.msra.mxu0 0.0
    %215 = vmatprep.subr.mxu0 0.0
    %216 = vmatpush1.msra.mxu0 0.0
    %217 = vmatprep.subr.mxu0 0.0
    %218 = vmatpush1.msra.mxu0 0.0
    %219 = vmatprep.subr.mxu0 0.0
    %220 = vmatpush1.msra.mxu0 0.0
    %221 = vmatprep.subr.mxu0 0.0
    %222 = vmatpush1.msra.mxu0 0.0
    %223 = vmatprep.subr.mxu0 0.0
    %224 = vmatpush1.msra.mxu0 0.0
    %225 = vmatprep.subr.mxu0 0.0
    %226 = vmatpush1.msra.mxu0 0.0
    %227 = vmatprep.subr.mxu0 0.0
    %228 = vmatpush1.msra.mxu0 0.0
    %229 = vmatprep.subr.mxu0 0.0
    %230 = vmatpush1.msra.mxu0 0.0
    %231 = vmatprep.subr.mxu0 0.0
    %232 = vmatpush1.msra.mxu0 0.0
    %233 = vmatprep.subr.mxu0 0.0
    %234 = vmatpush1.msra.mxu0 0.0
    %235 = vmatprep.subr.mxu0 0.0
    %236 = vmatpush1.msra.mxu0 0.0
    %237 = vmatprep.subr.mxu0 0.0
    %238 = vmatpush1.msra.mxu0 0.0
    %239 = vmatprep.mubr.f32.mxu0 0.0
    %240 = vmatmul.mubr.f32.gmra.mrb[0].mxu0 %v56
    %v241 = vpop.f32.mrb[0].mxu0
    %v242 = vadd.f32 0.0, %v241
    %v243 = vpop.f32.mrb[0].mxu0
    %244 = vmatprep.mubr.f32.mxu0 0.0
    %245 = vmatmul.mubr.f32.gmra.mrb[0].mxu0 %v59
    %v246 = vpop.f32.mrb[0].mxu0
    %v247 = vadd.f32 0.0, %v246
    %v248 = vpop.f32.mrb[0].mxu0
    %249 = vdwg.mxu0
    %v250 = vadd.f32 %v242, %v139
    %v251 = vadd.f32 %v247, %v145
    %v252 = vxor.u32 %v251, 2147483648
    %v253 = vmul.f32 %v252, 1.442695
    %v254 = vpow.pop %v253
    %v255 = vadd.f32 %v254, 1.0
    %v256 = vrcp.pop %v255
    %v257 = vmul.f32 1.0, %v256
    %v258 = vmul.f32 %v250, %v257
    %v259 = vadd.f32 %v159, %v258
    %s260 = scalar_lea.vmem [#allocation5], 8
    %261 = vst.msk [vmem:[%s260] sm:$0xff] %vm156, %v259
    // Predicated region
    $region18: #{tpu_custom_call.1} parent=1 // pred_check
      _
    $region19: #{tpu_custom_call.1} parent=1 // pred_check_branch
      %263 = sbr.rel (0) target = $region21
    $region20: #{tpu_custom_call.1} parent=1 // pred_region
      %s265 = ssub.s32 256, 256
      %266 = vsyncadd [#allocation4], %s265
      %s267 = sshll.u32 [#allocation5], 4
      %s268 = int_to_ptr.vmem [resolvable:$true] %s267
      %273 = dma.vmem_to_hbm [thread:$0]  %s268, 256, %s3, [#allocation4], 128, 128, 8
    $region21: #{tpu_custom_call.1} parent=1 // pred_fallthru
      _
    // Predicated region
    $region22: #{tpu_custom_call.1} parent=1 // pred_check
      _
    $region23: #{tpu_custom_call.1} parent=1 // pred_check_branch
      %275 = sbr.rel (0) target = $region25
    $region24: #{tpu_custom_call.1} parent=1 // pred_region
      %276 = dma.done [#allocation4], 256
    $region25: #{tpu_custom_call.1} parent=1 // pred_fallthru
      _
    %277 = vsyncpa [#allocation3], 1
    %278 = vsyncpa [#allocation4], 1

</llo_original>
